<compile_context>
chip_gen: v7x
topology: tpu7x:2x2x1
jax: 0.10.0
libtpu: 0.0.40
codegen_flags: <defaults>
</compile_context>

<pallas_src>
import functools

import jax
import jax.numpy as jnp
from jax.experimental import pallas as pl
from jax.experimental.pallas import tpu as pltpu

S_SCALE = 64.0
M_MARGIN = 0.35


def _round_up(x, mult):
    return (x + mult - 1) // mult * mult


# ---------------------------------------------------------------------------
# Pre-pass 1: per-class L2-normalize the (constant) center matrix, transpose to
# (D, C) and cast to the MXU operand dtype.  One-shot cost, amortized over the
# B/tile_b re-reads in the main grid.
# ---------------------------------------------------------------------------
def _center_prep_kernel(centers_ref, ncent_t_ref):
    c = centers_ref[...]                                        # (tile_c, d_pad) f32
    inv = jax.lax.rsqrt(jnp.maximum(
        jnp.sum(c * c, axis=-1, keepdims=True), 1e-30))         # EUP rsqrt
    ncent_t_ref[...] = (c * inv).T.astype(ncent_t_ref.dtype)    # (d_pad, tile_c)


# ---------------------------------------------------------------------------
# Pre-pass 2: PReLU + per-row L2 normalization of the features, cast to the MXU
# operand dtype.  Hoisted out of the (i, j) grid.
# ---------------------------------------------------------------------------
def _feat_prep_kernel(a_ref, feat_ref, nfeat_ref):
    a = a_ref[0, 0]                                             # PReLU slope (SMEM)
    f = feat_ref[...]                                           # (tile_b, d_pad) f32
    fp = jnp.where(f >= 0.0, f, a * f)
    inv = jax.lax.rsqrt(jnp.maximum(
        jnp.sum(fp * fp, axis=-1, keepdims=True), 1e-30))
    nfeat_ref[...] = (fp * inv).astype(nfeat_ref.dtype)


# ---------------------------------------------------------------------------
# Main kernel: MXU matmul + tiny one-hot margin epilogue.
# ---------------------------------------------------------------------------
def _cosface_kernel(label_ref, nfeat_ref, ncent_t_ref, logits_ref, margin_ref,
                    *, tile_c, s, m):
    # (tile_b, d_pad) @ (d_pad, tile_c) with f32 accumulation on the MXU.
    logits = jnp.dot(nfeat_ref[...], ncent_t_ref[...],
                     preferred_element_type=jnp.float32)
    # One-hot margin: (1, tile_c) global class-index row vs (tile_b, 1) labels.
    cls = (jax.lax.broadcasted_iota(jnp.int32, (1, tile_c), 1)
           + pl.program_id(1) * tile_c)
    onehot = jnp.where(cls == label_ref[...], m, 0.0)           # (tile_b, tile_c)
    logits_ref[...] = logits.astype(logits_ref.dtype)
    margin_ref[...] = (s * (logits - onehot)).astype(margin_ref.dtype)


def cosface_loss_margin(feat, label, centers, prelu_a, *,
                        s=S_SCALE, m=M_MARGIN,
                        mxu_dtype=jnp.bfloat16,
                        out_dtype=jnp.float32,
                        tile_b=None, tile_c=None):
    """feat: (B, D) f32, label: (B,) int32, centers: (C, D) f32, prelu_a: scalar.
    Returns (logits, margin_logits), each (B, C) in out_dtype (f32 default)."""
    B, D = feat.shape
    C, Dc = centers.shape
    assert D == Dc

    # Lane-align the contraction dim (zeros change neither norms nor dots).
    d_pad = _round_up(D, 128)

    # Tile plan: large lane-dense tiles -> fewer grid steps and fewer re-reads
    # of the center matrix, sized to stay double-buffered inside every
    # generation's VMEM budget (incl. v7x's 64 MiB physical per TensorCore).
    if tile_b is None:
        tile_b = min(512, _round_up(B, 8))
    if tile_c is None:
        tile_c = min(1024, _round_up(C, 128))

    b_pad = _round_up(B, tile_b)
    c_pad = _round_up(C, tile_c)

    feat_p = feat.astype(jnp.float32)
    if d_pad != D:
        feat_p = jnp.pad(feat_p, ((0, 0), (0, d_pad - D)))
    if b_pad != B:   # pad rows with 1.0 so padded rows never hit a 0 norm
        feat_p = jnp.pad(feat_p, ((0, b_pad - B), (0, 0)), constant_values=1.0)

    centers_p = centers.astype(jnp.float32)
    if d_pad != D:
        centers_p = jnp.pad(centers_p, ((0, 0), (0, d_pad - D)))
    if c_pad != C:
        centers_p = jnp.pad(centers_p, ((0, c_pad - C), (0, 0)),
                            constant_values=1.0)

    label_p = label.astype(jnp.int32).reshape(B, 1)
    if b_pad != B:
        label_p = jnp.pad(label_p, ((0, b_pad - B), (0, 0)), constant_values=-1)

    a_smem = jnp.asarray(prelu_a, jnp.float32).reshape(1, 1)

    # --- pre-pass 1: normalized, transposed, MXU-dtype centers (constant) ---
    ncent_t = pl.pallas_call(
        _center_prep_kernel,
        out_shape=jax.ShapeDtypeStruct((d_pad, c_pad), mxu_dtype),
        grid=(c_pad // tile_c,),
        in_specs=[pl.BlockSpec((tile_c, d_pad), lambda j: (j, 0))],
        out_specs=pl.BlockSpec((d_pad, tile_c), lambda j: (0, j)),
        compiler_params=pltpu.CompilerParams(
            dimension_semantics=("parallel",)),
    )(centers_p)

    # --- pre-pass 2: PReLU + row-normalized, MXU-dtype features ---
    nfeat = pl.pallas_call(
        _feat_prep_kernel,
        out_shape=jax.ShapeDtypeStruct((b_pad, d_pad), mxu_dtype),
        grid=(b_pad // tile_b,),
        in_specs=[pl.BlockSpec(memory_space=pltpu.SMEM),          # PReLU slope
                  pl.BlockSpec((tile_b, d_pad), lambda i: (i, 0))],
        out_specs=pl.BlockSpec((tile_b, d_pad), lambda i: (i, 0)),
        compiler_params=pltpu.CompilerParams(
            dimension_semantics=("parallel",)),
    )(a_smem, feat_p)

    # --- main (B-tile, C-tile) grid ---
    mxu_bytes = jnp.dtype(mxu_dtype).itemsize
    out_bytes = jnp.dtype(out_dtype).itemsize
    per_step = (2 * tile_b * d_pad * mxu_bytes            # nfeat, double-buffered
                + 2 * d_pad * tile_c * mxu_bytes          # ncent^T, double-buffered
                + 2 * tile_b * 128 * 4                    # label column
                + 2 * 2 * tile_b * tile_c * out_bytes)    # two output tiles
    # Sized from the tile plan; capped at 48 MiB so it is always safe on v7x's
    # 64 MiB physical VMEM while still unlocking larger user-supplied tiles on
    # v5e/v6e (128 MiB).
    vmem_limit = int(min(max(32 << 20, per_step * 3 // 2 + (4 << 20)), 48 << 20))

    kernel = functools.partial(_cosface_kernel, tile_c=tile_c, s=s, m=m)

    logits_p, margin_p = pl.pallas_call(
        kernel,
        out_shape=(jax.ShapeDtypeStruct((b_pad, c_pad), out_dtype),
                   jax.ShapeDtypeStruct((b_pad, c_pad), out_dtype)),
        grid=(b_pad // tile_b, c_pad // tile_c),
        in_specs=[
            pl.BlockSpec((tile_b, 1), lambda i, j: (i, 0)),       # label
            pl.BlockSpec((tile_b, d_pad), lambda i, j: (i, 0)),   # nfeat (bf16)
            pl.BlockSpec((d_pad, tile_c), lambda i, j: (0, j)),   # ncent^T (bf16)
        ],
        out_specs=(
            pl.BlockSpec((tile_b, tile_c), lambda i, j: (i, j)),
            pl.BlockSpec((tile_b, tile_c), lambda i, j: (i, j)),
        ),
        compiler_params=pltpu.CompilerParams(
            dimension_semantics=("parallel", "parallel"),
            vmem_limit_bytes=vmem_limit),
    )(label_p, nfeat, ncent_t)

    return logits_p[:B, :C], margin_p[:B, :C]


def _reference(feat, label, centers, prelu_a):
    fp = jnp.where(feat >= 0, feat, prelu_a * feat)
    nfeat = fp / jnp.linalg.norm(fp, axis=-1, keepdims=True)
    ncent = centers / jnp.linalg.norm(centers, axis=-1, keepdims=True)
    logits = nfeat @ ncent.T
    onehot = jax.nn.one_hot(label, centers.shape[0], dtype=jnp.float32) * M_MARGIN
    return logits, S_SCALE * (logits - onehot)


if __name__ == "__main__":
    key = jax.random.PRNGKey(0)
    k_feat, k_cent, k_lab = jax.random.split(key, 3)

    batch = 8
    feat_dim = 32
    num_classes = 16

    feat = jax.random.normal(k_feat, (batch, feat_dim), dtype=jnp.float32)
    # nn.Parameter(torch.randn(num_classes, feat_dim)) -> deterministic normal init
    centers = jax.random.normal(k_cent, (num_classes, feat_dim), dtype=jnp.float32)
    label = jax.random.randint(k_lab, (batch,), 0, num_classes, dtype=jnp.int32)
    prelu_a = jnp.float32(0.25)  # nn.PReLU() default init

    ref_logits, ref_margin = _reference(feat, label, centers, prelu_a)

    # Full-precision MXU path: tight check against the pure-JAX reference.
    logits, margin = cosface_loss_margin(feat, label, centers, prelu_a,
                                         mxu_dtype=jnp.float32)
    jax.block_until_ready((logits, margin))
    assert logits.shape == (batch, num_classes)
    assert margin.shape == (batch, num_classes)
    assert jnp.allclose(logits, ref_logits, atol=1e-4, rtol=1e-5)
    assert jnp.allclose(margin, ref_margin, atol=1e-2, rtol=1e-5)

    # Production default: bf16 MXU operands + f32 accumulation (relaxed check).
    logits16, margin16 = cosface_loss_margin(feat, label, centers, prelu_a)
    jax.block_until_ready((logits16, margin16))
    assert jnp.allclose(logits16, ref_logits, atol=3e-2)
    assert jnp.allclose(margin16, ref_margin, atol=2.5)

    print("KERNEL_OK")
</pallas_src>

<mosaic_0001>
module attributes {stable_mosaic.version = 11 : i64} {
  func.func @_center_prep_kernel(%arg0: i32, %arg1: memref<128x128xf32, #tpu.memory_space<vmem>>, %arg2: memref<128x128xf32, #tpu.memory_space<vmem>>) attributes {dimension_semantics = [#tpu.dimension_semantics<parallel>], iteration_bounds = array<i64: 1>, scalar_prefetch = 0 : i64, scratch_operands = 0 : i64, tpu.core_type = #tpu.core_type<tc>, window_params = [{transform_indices = @transform_0, window_bounds = array<i64: 128, 128>}, {transform_indices = @transform_1, window_bounds = array<i64: 128, 128>}]} {
    %c0 = arith.constant 0 : index
    %c0_0 = arith.constant 0 : index
    %0 = vector.load %arg1[%c0, %c0_0] : memref<128x128xf32, #tpu.memory_space<vmem>>, vector<128x128xf32>
    %1 = arith.mulf %0, %0 : vector<128x128xf32>
    %cst = arith.constant dense<0.000000e+00> : vector<128xf32>
    %2 = vector.multi_reduction <add>, %1, %cst [1] : vector<128x128xf32> to vector<128xf32>
    %3 = vector.shape_cast %2 : vector<128xf32> to vector<128x1xf32>
    %cst_1 = arith.constant 1.000000e-30 : f32
    %4 = vector.broadcast %cst_1 : f32 to vector<128x1xf32>
    %5 = arith.maximumf %3, %4 : vector<128x1xf32>
    %6 = math.rsqrt %5 : vector<128x1xf32>
    %7 = vector.broadcast %6 : vector<128x1xf32> to vector<128x128xf32>
    %8 = arith.mulf %0, %7 : vector<128x128xf32>
    %9 = tpu.transpose %8, [1, 0] : vector<128x128xf32> -> vector<128x128xf32>
    %c0_2 = arith.constant 0 : index
    %c0_3 = arith.constant 0 : index
    %10 = vector.load %arg2[%c0_2, %c0_3] : memref<128x128xf32, #tpu.memory_space<vmem>>, vector<128x128xf32>
    tpu.vector_store %arg2[%c0_2, %c0_3], %9 {strides = array<i32>} : memref<128x128xf32, #tpu.memory_space<vmem>>, vector<128x128xf32>,
    return
  }
  func.func @transform_0(%arg0: i32) -> (i32, i32) {
    %c0_i32 = arith.constant 0 : i32
    %c0_i32_0 = arith.constant 0 : i32
    return %arg0, %c0_i32 : i32, i32
  }
  func.func @transform_1(%arg0: i32) -> (i32, i32) {
    %c0_i32 = arith.constant 0 : i32
    %c0_i32_0 = arith.constant 0 : i32
    return %c0_i32, %arg0 : i32, i32
  }
}

</mosaic_0001>

<llo_original>
// kernel: tpu_custom_call.1
$region0: #{tpu_custom_call.1}
  #allocation0 [shape = 'u32[]', space=smem, size = 0x4, offset = 0x4, fixed_abs, tag = 'smem constant byte address 0x4 - core index']
  #allocation1 [shape = 'u32[144,128]{1,0:T(1,128)}', space=vmem, size = 0x12000, scoped, tag = 'internal scratch']
  %s0 = inlined_call_operand.hbm [shape: f32[128,128], index: 0, kind: input, shape index: {}]
  %s1 = inlined_call_operand.hbm [shape: f32[128,128], index: 1, kind: output, shape index: {}]
  %s2 = sld [smem:[#allocation0]]
  $region18: #{tpu_custom_call.1} parent=0
    _
  %s4 = ssub.s32 1, %s2
  %s5 = scalar_select 0, %s4, %s2
  $region1: #{tpu_custom_call.1} parent=0
    #allocation2 [shape = 'u8[65536]{0}', space=vmem, size = 0x10000, scoped, tag = 'input window, operand 0, single buffered']
    #allocation3 [shape = 's32[1]{0}', space=sflag, size = 0x4, scoped, tag = 'scoped memory for tpu_custom_call.1']
    #allocation4 [shape = 's32[1]{0}', space=sflag, size = 0x4, scoped, tag = 'scoped memory for tpu_custom_call.1']
    #allocation5 [shape = 'u8[65536]{0}', space=vmem, size = 0x10000, scoped, tag = 'output window, operand 0, single buffered']
    %6 = vsyncpa [#allocation3], 0
    %7 = vsyncpa [#allocation4], 0
    // Predicated region
    $region2: #{tpu_custom_call.1} parent=1 // pred_check
      _
    $region3: #{tpu_custom_call.1} parent=1 // pred_check_branch
      %9 = sbr.rel (0) target = $region5
    $region4: #{tpu_custom_call.1} parent=1 // pred_region
      %s11 = ssub.s32 2048, 2048
      %12 = vsyncadd [#allocation3], %s11
      %s13 = sshll.u32 [#allocation2], 4
      %s14 = int_to_ptr.vmem [resolvable:$true] %s13
      %19 = dma.hbm_to_vmem [thread:$0]  %s0, 2048, %s14, [#allocation3], 128, 128, 8
    $region5: #{tpu_custom_call.1} parent=1 // pred_fallthru
      _
    // Predicated region
    $region6: #{tpu_custom_call.1} parent=1 // pred_check
      _
    $region7: #{tpu_custom_call.1} parent=1 // pred_check_branch
      %21 = sbr.rel (0) target = $region9
    $region8: #{tpu_custom_call.1} parent=1 // pred_region
      %22 = dma.done [#allocation3], 2048
    $region9: #{tpu_custom_call.1} parent=1 // pred_fallthru
      _
    %v23 = vld [vmem:[#allocation2] sm:$0xff]
    %v24 = vld [vmem:[#allocation2 + $0x8] sm:$0xff]
    %v25 = vld [vmem:[#allocation2 + $0x10] sm:$0xff]
    %v26 = vld [vmem:[#allocation2 + $0x18] sm:$0xff]
    %v27 = vld [vmem:[#allocation2 + $0x20] sm:$0xff]
    %v28 = vld [vmem:[#allocation2 + $0x28] sm:$0xff]
    %v29 = vld [vmem:[#allocation2 + $0x30] sm:$0xff]
    %v30 = vld [vmem:[#allocation2 + $0x38] sm:$0xff]
    %v31 = vld [vmem:[#allocation2 + $0x40] sm:$0xff]
    %v32 = vld [vmem:[#allocation2 + $0x48] sm:$0xff]
    %v33 = vld [vmem:[#allocation2 + $0x50] sm:$0xff]
    %v34 = vld [vmem:[#allocation2 + $0x58] sm:$0xff]
    %v35 = vld [vmem:[#allocation2 + $0x60] sm:$0xff]
    %v36 = vld [vmem:[#allocation2 + $0x68] sm:$0xff]
    %v37 = vld [vmem:[#allocation2 + $0x70] sm:$0xff]
    %v38 = vld [vmem:[#allocation2 + $0x78] sm:$0xff]
    %v39 = vmul.f32 %v23, %v23
    %v40 = vmul.f32 %v24, %v24
    %v41 = vmul.f32 %v25, %v25
    %v42 = vmul.f32 %v26, %v26
    %v43 = vmul.f32 %v27, %v27
    %v44 = vmul.f32 %v28, %v28
    %v45 = vmul.f32 %v29, %v29
    %v46 = vmul.f32 %v30, %v30
    %v47 = vmul.f32 %v31, %v31
    %v48 = vmul.f32 %v32, %v32
    %v49 = vmul.f32 %v33, %v33
    %v50 = vmul.f32 %v34, %v34
    %v51 = vmul.f32 %v35, %v35
    %v52 = vmul.f32 %v36, %v36
    %v53 = vmul.f32 %v37, %v37
    %v54 = vmul.f32 %v38, %v38
    %55 = vadd.xlane.f32.xlu0 %v39
    %v56 = vpop.xlane.xlu0 %55
    %57 = vadd.xlane.f32.xlu0 %v40
    %v58 = vpop.xlane.xlu0 %57
    %59 = vadd.xlane.f32.xlu0 %v41
    %v60 = vpop.xlane.xlu0 %59
    %61 = vadd.xlane.f32.xlu0 %v42
    %v62 = vpop.xlane.xlu0 %61
    %63 = vadd.xlane.f32.xlu0 %v43
    %v64 = vpop.xlane.xlu0 %63
    %65 = vadd.xlane.f32.xlu0 %v44
    %v66 = vpop.xlane.xlu0 %65
    %67 = vadd.xlane.f32.xlu0 %v45
    %v68 = vpop.xlane.xlu0 %67
    %69 = vadd.xlane.f32.xlu0 %v46
    %v70 = vpop.xlane.xlu0 %69
    %71 = vadd.xlane.f32.xlu0 %v47
    %v72 = vpop.xlane.xlu0 %71
    %73 = vadd.xlane.f32.xlu0 %v48
    %v74 = vpop.xlane.xlu0 %73
    %75 = vadd.xlane.f32.xlu0 %v49
    %v76 = vpop.xlane.xlu0 %75
    %77 = vadd.xlane.f32.xlu0 %v50
    %v78 = vpop.xlane.xlu0 %77
    %79 = vadd.xlane.f32.xlu0 %v51
    %v80 = vpop.xlane.xlu0 %79
    %81 = vadd.xlane.f32.xlu0 %v52
    %v82 = vpop.xlane.xlu0 %81
    %83 = vadd.xlane.f32.xlu0 %v53
    %v84 = vpop.xlane.xlu0 %83
    %85 = vadd.xlane.f32.xlu0 %v54
    %v86 = vpop.xlane.xlu0 %85
    %v87 = vmax.f32 %v56, 1e-30
    %v88 = vmax.f32 %v58, 1e-30
    %v89 = vmax.f32 %v60, 1e-30
    %v90 = vmax.f32 %v62, 1e-30
    %v91 = vmax.f32 %v64, 1e-30
    %v92 = vmax.f32 %v66, 1e-30
    %v93 = vmax.f32 %v68, 1e-30
    %v94 = vmax.f32 %v70, 1e-30
    %v95 = vmax.f32 %v72, 1e-30
    %v96 = vmax.f32 %v74, 1e-30
    %v97 = vmax.f32 %v76, 1e-30
    %v98 = vmax.f32 %v78, 1e-30
    %v99 = vmax.f32 %v80, 1e-30
    %v100 = vmax.f32 %v82, 1e-30
    %v101 = vmax.f32 %v84, 1e-30
    %v102 = vmax.f32 %v86, 1e-30
    %v103 = vrsqrt.pop %v87
    %v104 = vrsqrt.pop %v88
    %v105 = vrsqrt.pop %v89
    %v106 = vrsqrt.pop %v90
    %v107 = vrsqrt.pop %v91
    %v108 = vrsqrt.pop %v92
    %v109 = vrsqrt.pop %v93
    %v110 = vrsqrt.pop %v94
    %v111 = vrsqrt.pop %v95
    %v112 = vrsqrt.pop %v96
    %v113 = vrsqrt.pop %v97
    %v114 = vrsqrt.pop %v98
    %v115 = vrsqrt.pop %v99
    %v116 = vrsqrt.pop %v100
    %v117 = vrsqrt.pop %v101
    %v118 = vrsqrt.pop %v102
    %v119 = vmul.f32 %v23, %v103
    %v120 = vmul.f32 %v24, %v104
    %v121 = vmul.f32 %v25, %v105
    %v122 = vmul.f32 %v26, %v106
    %v123 = vmul.f32 %v27, %v107
    %v124 = vmul.f32 %v28, %v108
    %v125 = vmul.f32 %v29, %v109
    %v126 = vmul.f32 %v30, %v110
    %v127 = vmul.f32 %v31, %v111
    %v128 = vmul.f32 %v32, %v112
    %v129 = vmul.f32 %v33, %v113
    %v130 = vmul.f32 %v34, %v114
    %v131 = vmul.f32 %v35, %v115
    %v132 = vmul.f32 %v36, %v116
    %v133 = vmul.f32 %v37, %v117
    %v134 = vmul.f32 %v38, %v118
    %135 = vxpose.xlu0.b32.start [1/16] %v119, 128
    %136 = vxpose.xlu0.b32.cont [2/16] %v120, 128
    %137 = vxpose.xlu0.b32.cont [3/16] %v121, 128
    %138 = vxpose.xlu0.b32.cont [4/16] %v122, 128
    %139 = vxpose.xlu0.b32.cont [5/16] %v123, 128
    %140 = vxpose.xlu0.b32.cont [6/16] %v124, 128
    %141 = vxpose.xlu0.b32.cont [7/16] %v125, 128
    %142 = vxpose.xlu0.b32.cont [8/16] %v126, 128
    %143 = vxpose.xlu0.b32.cont [9/16] %v127, 128
    %144 = vxpose.xlu0.b32.cont [10/16] %v128, 128
    %145 = vxpose.xlu0.b32.cont [11/16] %v129, 128
    %146 = vxpose.xlu0.b32.cont [12/16] %v130, 128
    %147 = vxpose.xlu0.b32.cont [13/16] %v131, 128
    %148 = vxpose.xlu0.b32.cont [14/16] %v132, 128
    %149 = vxpose.xlu0.b32.cont [15/16] %v133, 128
    %150 = vxpose.xlu0.b32.end [16/16] %v134, 128
    %v151 = vpop.trf.xlu0
    %v152 = vpop.trf.xlu0
    %v153 = vpop.trf.xlu0
    %v154 = vpop.trf.xlu0
    %v155 = vpop.trf.xlu0
    %v156 = vpop.trf.xlu0
    %v157 = vpop.trf.xlu0
    %v158 = vpop.trf.xlu0
    %v159 = vpop.trf.xlu0
    %v160 = vpop.trf.xlu0
    %v161 = vpop.trf.xlu0
    %v162 = vpop.trf.xlu0
    %v163 = vpop.trf.xlu0
    %v164 = vpop.trf.xlu0
    %v165 = vpop.trf.xlu0
    %v166 = vpop.trf.xlu0
    %167 = vst [vmem:[#allocation5] sm:$0xff] %v151
    %168 = vst [vmem:[#allocation5 + $0x8] sm:$0xff] %v152
    %169 = vst [vmem:[#allocation5 + $0x10] sm:$0xff] %v153
    %170 = vst [vmem:[#allocation5 + $0x18] sm:$0xff] %v154
    %171 = vst [vmem:[#allocation5 + $0x20] sm:$0xff] %v155
    %172 = vst [vmem:[#allocation5 + $0x28] sm:$0xff] %v156
    %173 = vst [vmem:[#allocation5 + $0x30] sm:$0xff] %v157
    %174 = vst [vmem:[#allocation5 + $0x38] sm:$0xff] %v158
    %175 = vst [vmem:[#allocation5 + $0x40] sm:$0xff] %v159
    %176 = vst [vmem:[#allocation5 + $0x48] sm:$0xff] %v160
    %177 = vst [vmem:[#allocation5 + $0x50] sm:$0xff] %v161
    %178 = vst [vmem:[#allocation5 + $0x58] sm:$0xff] %v162
    %179 = vst [vmem:[#allocation5 + $0x60] sm:$0xff] %v163
    %180 = vst [vmem:[#allocation5 + $0x68] sm:$0xff] %v164
    %181 = vst [vmem:[#allocation5 + $0x70] sm:$0xff] %v165
    %182 = vst [vmem:[#allocation5 + $0x78] sm:$0xff] %v166
    // Predicated region
    $region10: #{tpu_custom_call.1} parent=1 // pred_check
      _
    $region11: #{tpu_custom_call.1} parent=1 // pred_check_branch
      %184 = sbr.rel (0) target = $region13
    $region12: #{tpu_custom_call.1} parent=1 // pred_region
      %s186 = ssub.s32 2048, 2048
      %187 = vsyncadd [#allocation4], %s186
      %s188 = sshll.u32 [#allocation5], 4
      %s189 = int_to_ptr.vmem [resolvable:$true] %s188
      %194 = dma.vmem_to_hbm [thread:$0]  %s189, 2048, %s1, [#allocation4], 128, 128, 8
    $region13: #{tpu_custom_call.1} parent=1 // pred_fallthru
      _
    // Predicated region
    $region14: #{tpu_custom_call.1} parent=1 // pred_check
      _
    $region15: #{tpu_custom_call.1} parent=1 // pred_check_branch
      %196 = sbr.rel (0) target = $region17
    $region16: #{tpu_custom_call.1} parent=1 // pred_region
      %197 = dma.done [#allocation4], 2048
    $region17: #{tpu_custom_call.1} parent=1 // pred_fallthru
      _
    %198 = vsyncpa [#allocation3], 1
    %199 = vsyncpa [#allocation4], 1

</llo_original>
